<compile_context>
chip_gen: v7x
topology: tpu7x:2x2x1
jax: 0.10.0
libtpu: 0.0.40
codegen_flags: <defaults>
</compile_context>

<pallas_src>
import jax
import jax.numpy as jnp
from jax import lax
from jax.experimental import pallas as pl
from jax.experimental.pallas import tpu as pltpu


def _projection_head_kernel(x_ref, w_ref, b_ref, o_ref):
    # x_ref: (TM, D_in)       native dtype
    # w_ref: (D_out_p, D_in)  native dtype, PyTorch layout (rows = output features)
    # b_ref: (1, D_out_p)
    # o_ref: (TM, D_out_p)
    x = x_ref[...]
    w = w_ref[...]

    # Linear: y = x @ W^T + b.  Contract x dim 1 with w dim 1 (trans_b matmul on
    # the MXU), accumulate in f32; bias is added in f32.
    y = lax.dot_general(
        x, w,
        dimension_numbers=(((1,), (1,)), ((), ())),
        preferred_element_type=jnp.float32,
    ) + b_ref[...].astype(jnp.float32)

    # F.normalize(y, dim=-1, eps=1e-12):  y / max(||y||_2, 1e-12)
    #   == y * rsqrt(max(sum(y^2), 1e-24))   (exact rewrite; rsqrt -> EUP)
    sq = jnp.sum(y * y, axis=-1, keepdims=True)
    inv = lax.rsqrt(jnp.maximum(sq, 1e-24))
    o_ref[...] = (y * inv).astype(o_ref.dtype)


def _round_up(x, m):
    return ((x + m - 1) // m) * m


def _choose_tile_m(B, D_in, D_out_p, itemsize):
    # Aim for >= 2 grid steps (megacore sharding of the "parallel" axis) while
    # giving large batches big tiles; cap so the working set fits VMEM with
    # headroom.
    if B <= 16:
        tm = max(8, B // 2)
    else:
        tm = min(1024, pl.cdiv(B, 2))
    tm = _round_up(tm, 8)

    # Rough double-buffered VMEM budget (~24 MiB): 2x (x tile + out tile) in
    # native dtype, resident weight+bias, plus the f32 intermediate.
    budget = 24 * 1024 * 1024
    fixed = 2 * (D_out_p * D_in + D_out_p) * itemsize
    per_row = 2 * (D_in + D_out_p) * itemsize + D_out_p * 4
    max_rows = max(8, (budget - fixed) // max(per_row, 1))
    tm = min(tm, _round_up(max_rows, 8) if max_rows >= 8 else 8)
    return tm


def protein_projection_head(x, weight, bias, *, tile_m=None):
    """x: [B, D_in], weight: [D_out, D_in] (PyTorch layout), bias: [D_out]."""
    B, D_in = x.shape
    D_out = weight.shape[0]

    # Pad output features to a multiple of 128 lanes (zero rows of W / zero bias
    # entries) so output stores are lane-dense; padded cols contribute 0 to the
    # row norm, so slicing them off gives the exact reference result.
    D_out_p = _round_up(D_out, 128)

    if tile_m is None:
        tile_m = _choose_tile_m(B, D_in, D_out_p, x.dtype.itemsize)

    # Pad batch to a multiple of tile_m (padded rows produce normalize(bias),
    # which is finite and sliced off below).
    B_p = _round_up(max(B, tile_m), tile_m)

    x_p = x if B_p == B else jnp.pad(x, ((0, B_p - B), (0, 0)))
    if D_out_p == D_out:
        w_p = weight
        b_p = bias.reshape(1, D_out)
    else:
        w_p = jnp.pad(weight, ((0, D_out_p - D_out), (0, 0)))
        b_p = jnp.pad(bias, (0, D_out_p - D_out)).reshape(1, D_out_p)

    grid = (B_p // tile_m,)

    out_p = pl.pallas_call(
        _projection_head_kernel,
        out_shape=jax.ShapeDtypeStruct((B_p, D_out_p), x.dtype),
        grid_spec=pltpu.PrefetchScalarGridSpec(
            num_scalar_prefetch=0,
            grid=grid,
            in_specs=[
                pl.BlockSpec((tile_m, D_in), lambda i: (i, 0)),    # x tile
                pl.BlockSpec((D_out_p, D_in), lambda i: (0, 0)),   # weight (resident)
                pl.BlockSpec((1, D_out_p), lambda i: (0, 0)),      # bias (resident)
            ],
            out_specs=pl.BlockSpec((tile_m, D_out_p), lambda i: (i, 0)),
        ),
        compiler_params=pltpu.CompilerParams(
            dimension_semantics=("parallel",),
        ),
    )(x_p, w_p, b_p)

    return out_p[:B, :D_out]


if __name__ == "__main__":
    # Small shapes consistent with the module: batch=16, input_dim=32, output_dim=64
    B, D_in, D_out = 16, 32, 64

    key = jax.random.PRNGKey(0)
    kx, kw, kb = jax.random.split(key, 3)

    # Deterministic parameter init (mimics nn.Linear's uniform(-1/sqrt(fan_in), ...))
    bound = 1.0 / (D_in ** 0.5)
    weight = jax.random.uniform(kw, (D_out, D_in), jnp.float32, -bound, bound)
    bias = jax.random.uniform(kb, (D_out,), jnp.float32, -bound, bound)

    x = jax.random.normal(kx, (B, D_in), jnp.float32)

    out = protein_projection_head(x, weight, bias)
    out = jax.block_until_ready(out)

    # Reference check in plain JAX (same semantics as F.normalize(fc(x), dim=-1))
    y_ref = x @ weight.T + bias
    ref = y_ref / jnp.maximum(
        jnp.sqrt(jnp.sum(y_ref * y_ref, axis=-1, keepdims=True)), 1e-12
    )
    assert out.shape == (B, D_out)
    assert jnp.allclose(out, ref, atol=1e-5, rtol=1e-5)

    print("KERNEL_OK")
</pallas_src>

<mosaic_0001>
module attributes {stable_mosaic.version = 11 : i64} {
  func.func @_projection_head_kernel(%arg0: i32, %arg1: memref<8x32xf32, #tpu.memory_space<vmem>>, %arg2: memref<128x32xf32, #tpu.memory_space<vmem>>, %arg3: memref<1x128xf32, #tpu.memory_space<vmem>>, %arg4: memref<8x128xf32, #tpu.memory_space<vmem>>) attributes {dimension_semantics = [#tpu.dimension_semantics<parallel>], iteration_bounds = array<i64: 2>, scalar_prefetch = 0 : i64, scratch_operands = 0 : i64, tpu.core_type = #tpu.core_type<tc>, window_params = [{transform_indices = @transform_0, window_bounds = array<i64: 8, 32>}, {pipeline_mode = #tpu.pipeline_mode<synchronous>, transform_indices = @transform_1, window_bounds = array<i64: 128, 32>}, {pipeline_mode = #tpu.pipeline_mode<synchronous>, transform_indices = @transform_2, window_bounds = array<i64: 1, 128>}, {transform_indices = @transform_3, window_bounds = array<i64: 8, 128>}]} {
    %c0 = arith.constant 0 : index
    %c0_0 = arith.constant 0 : index
    %0 = vector.load %arg1[%c0, %c0_0] : memref<8x32xf32, #tpu.memory_space<vmem>>, vector<8x32xf32>
    %c0_1 = arith.constant 0 : index
    %c0_2 = arith.constant 0 : index
    %1 = vector.load %arg2[%c0_1, %c0_2] : memref<128x32xf32, #tpu.memory_space<vmem>>, vector<128x32xf32>
    %cst = arith.constant dense<0.000000e+00> : vector<8x128xf32>
    %2 = tpu.matmul %0, %1, %cst {dimension_numbers = #tpu.dot_dimension_numbers<[1], [1], [0], [0], [0, 0, 1, 0], [], []>} : vector<8x32xf32>, vector<128x32xf32>, vector<8x128xf32> -> vector<8x128xf32>
    %c0_3 = arith.constant 0 : index
    %c0_4 = arith.constant 0 : index
    %3 = vector.load %arg3[%c0_3, %c0_4] : memref<1x128xf32, #tpu.memory_space<vmem>>, vector<1x128xf32>
    %4 = vector.broadcast %3 : vector<1x128xf32> to vector<8x128xf32>
    %5 = arith.addf %2, %4 : vector<8x128xf32>
    %6 = arith.mulf %5, %5 : vector<8x128xf32>
    %cst_5 = arith.constant dense<0.000000e+00> : vector<8xf32>
    %7 = vector.multi_reduction <add>, %6, %cst_5 [1] : vector<8x128xf32> to vector<8xf32>
    %8 = vector.shape_cast %7 : vector<8xf32> to vector<8x1xf32>
    %cst_6 = arith.constant 1.000000e-24 : f32
    %9 = vector.broadcast %cst_6 : f32 to vector<8x1xf32>
    %10 = arith.maximumf %8, %9 : vector<8x1xf32>
    %11 = math.rsqrt %10 : vector<8x1xf32>
    %12 = vector.broadcast %11 : vector<8x1xf32> to vector<8x128xf32>
    %13 = arith.mulf %5, %12 : vector<8x128xf32>
    %c0_7 = arith.constant 0 : index
    %c0_8 = arith.constant 0 : index
    %14 = vector.load %arg4[%c0_7, %c0_8] : memref<8x128xf32, #tpu.memory_space<vmem>>, vector<8x128xf32>
    tpu.vector_store %arg4[%c0_7, %c0_8], %13 {strides = array<i32>} : memref<8x128xf32, #tpu.memory_space<vmem>>, vector<8x128xf32>,
    return
  }
  func.func @transform_0(%arg0: i32) -> (i32, i32) {
    %c0_i32 = arith.constant 0 : i32
    %c0_i32_0 = arith.constant 0 : i32
    return %arg0, %c0_i32 : i32, i32
  }
  func.func @transform_1(%arg0: i32) -> (i32, i32) {
    %c0_i32 = arith.constant 0 : i32
    %c0_i32_0 = arith.constant 0 : i32
    %c0_i32_1 = arith.constant 0 : i32
    return %c0_i32, %c0_i32_0 : i32, i32
  }
  func.func @transform_2(%arg0: i32) -> (i32, i32) {
    %c0_i32 = arith.constant 0 : i32
    %c0_i32_0 = arith.constant 0 : i32
    %c0_i32_1 = arith.constant 0 : i32
    return %c0_i32, %c0_i32_0 : i32, i32
  }
  func.func @transform_3(%arg0: i32) -> (i32, i32) {
    %c0_i32 = arith.constant 0 : i32
    %c0_i32_0 = arith.constant 0 : i32
    return %arg0, %c0_i32 : i32, i32
  }
}

</mosaic_0001>

<llo_original>
// kernel: tpu_custom_call.1
$region0: #{tpu_custom_call.1}
  #allocation0 [shape = 'u32[]', space=smem, size = 0x4, offset = 0x4, fixed_abs, tag = 'smem constant byte address 0x4 - core index']
  #allocation1 [shape = 'u32[144,128]{1,0:T(1,128)}', space=vmem, size = 0x12000, scoped, tag = 'internal scratch']
  %s0 = inlined_call_operand.vmem [shape: f32[16,32], index: 0, kind: input, shape index: {}]
  %s1 = inlined_call_operand.vmem [shape: f32[128,32], index: 1, kind: input, shape index: {}]
  %s2 = inlined_call_operand.vmem [shape: f32[1,128], index: 2, kind: input, shape index: {}]
  %s3 = inlined_call_operand.hbm [shape: f32[16,128], index: 3, kind: output, shape index: {}]
  %s4 = sld [smem:[#allocation0]]
  $region45: #{tpu_custom_call.1} parent=0
    _
  %s6 = ssub.s32 1, %s4
  %s7 = scalar_select 0, %s6, %s4
  $region1: #{tpu_custom_call.1} parent=0
    #allocation2 [shape = 'u8[8192]{0}', space=vmem, size = 0x2000, scoped, tag = 'output window, operand 0']
    #allocation3 [shape = 's32[2]{0}', space=sflag, size = 0x8, scoped, tag = 'scoped memory for tpu_custom_call.1']
    %8 = vsyncpa [#allocation3], 0
    %s9 = scalar_lea.sflag [#allocation3], 1
    %10 = vsyncpa %s9, 0
    loop: start=0, step=1, limit=4
    $region2: #{tpu_custom_call.1} parent=1 // loop_pre_header
      _
    $region3: #{tpu_custom_call.1} parent=1 // loop_header
      %s12 = sphi 0, %s16
      %p13 = scmp.ge.s32.totalorder %s12, 4
      %s22 = sphi 0, %s24
      %s25 = sphi 0, %s22
      %s26 = sphi 0, %s25
      %s42 = sphi 0, %s26
      %s46 = sphi 0, %s46
      %s48 = sphi 0, %s46
      %s49 = sphi 0, %s48
      %s63 = sphi 0, %s49
      %s67 = sphi 0, %s67
      %s69 = sphi 0, %s67
      %s70 = sphi 0, %s69
      %s84 = sphi 0, %s70
      %s90 = sphi 0, %s92
      %s93 = sphi 0, %s90
      %s94 = sphi 0, %s93
      %s110 = sphi 0, %s94
    $region4: #{tpu_custom_call.1} parent=1 // loop_header_branch
      %15 = sbr.rel (%p13) target = $region8
    $region5: #{tpu_custom_call.1} parent=1 // loop_body
      %s17 = ssub.s32 %s12, 1
      %s18 = ssub.s32 %s12, 2
      %s19 = sadd.s32 %s12, 1
      %s20 = ssub.s32 %s12, %s19
      %p21 = scmp.eq.s32.totalorder %s20, 0
      %s23 = sadd.s32 %s22, 1
      %s24 = scalar_select %p21, %s22, %s23
      %p27 = pneg %p21
      %p28 = scmp.eq.s32.totalorder %s12, 1
      %p29 = por %p27, %p28
      %p30 = scmp.ne.s32.totalorder %s22, %s25
      %p31 = scmp.eq.s32.totalorder %s12, 0
      %p32 = por %p30, %p31
      %p33 = scmp.ne.s32.totalorder %s22, %s25
      %p34 = scmp.eq.s32.totalorder %s17, 1
      %p35 = por %p33, %p34
      %p36 = scmp.ne.s32.totalorder %s25, %s26
      %p37 = scmp.eq.s32.totalorder %s17, 0
      %p38 = por %p36, %p37
      %p39 = scmp.ne.s32.totalorder %s25, %s26
      %p40 = scmp.eq.s32.totalorder %s18, 1
      %p41 = por %p39, %p40
      %p43 = scmp.ne.s32.totalorder %s26, %s42
      %p44 = scmp.eq.s32.totalorder %s18, 0
      %p45 = por %p43, %p44
      %s47 = sadd.s32 %s46, 1
      %p50 = scmp.eq.s32.totalorder %s12, 1
      %p51 = scmp.ne.s32.totalorder %s46, %s48
      %p52 = scmp.eq.s32.totalorder %s12, 0
      %p53 = por %p51, %p52
      %p54 = scmp.ne.s32.totalorder %s46, %s48
      %p55 = scmp.eq.s32.totalorder %s17, 1
      %p56 = por %p54, %p55
      %p57 = scmp.ne.s32.totalorder %s48, %s49
      %p58 = scmp.eq.s32.totalorder %s17, 0
      %p59 = por %p57, %p58
      %p60 = scmp.ne.s32.totalorder %s48, %s49
      %p61 = scmp.eq.s32.totalorder %s18, 1
      %p62 = por %p60, %p61
      %p64 = scmp.ne.s32.totalorder %s49, %s63
      %p65 = scmp.eq.s32.totalorder %s18, 0
      %p66 = por %p64, %p65
      %s68 = sadd.s32 %s67, 1
      %p71 = scmp.eq.s32.totalorder %s12, 1
      %p72 = scmp.ne.s32.totalorder %s67, %s69
      %p73 = scmp.eq.s32.totalorder %s12, 0
      %p74 = por %p72, %p73
      %p75 = scmp.ne.s32.totalorder %s67, %s69
      %p76 = scmp.eq.s32.totalorder %s17, 1
      %p77 = por %p75, %p76
      %p78 = scmp.ne.s32.totalorder %s69, %s70
      %p79 = scmp.eq.s32.totalorder %s17, 0
      %p80 = por %p78, %p79
      %p81 = scmp.ne.s32.totalorder %s69, %s70
      %p82 = scmp.eq.s32.totalorder %s18, 1
      %p83 = por %p81, %p82
      %p85 = scmp.ne.s32.totalorder %s70, %s84
      %p86 = scmp.eq.s32.totalorder %s18, 0
      %p87 = por %p85, %p86
      %s88 = ssub.s32 %s12, %s19
      %p89 = scmp.eq.s32.totalorder %s88, 0
      %s91 = sadd.s32 %s90, 1
      %s92 = scalar_select %p89, %s90, %s91
      %p95 = pneg %p89
      %p96 = scmp.eq.s32.totalorder %s12, 1
      %p97 = por %p95, %p96
      %p98 = scmp.ne.s32.totalorder %s90, %s93
      %p99 = scmp.eq.s32.totalorder %s12, 0
      %p100 = por %p98, %p99
      %p101 = scmp.ne.s32.totalorder %s90, %s93
      %p102 = scmp.eq.s32.totalorder %s17, 1
      %p103 = por %p101, %p102
      %p104 = scmp.ne.s32.totalorder %s93, %s94
      %p105 = scmp.eq.s32.totalorder %s17, 0
      %p106 = por %p104, %p105
      %p107 = scmp.ne.s32.totalorder %s93, %s94
      %p108 = scmp.eq.s32.totalorder %s18, 1
      %p109 = por %p107, %p108
      %p111 = scmp.ne.s32.totalorder %s94, %s110
      %p112 = scmp.eq.s32.totalorder %s18, 0
      %p113 = por %p111, %p112
      %p114 = scmp.le.s32.totalorder 1, %s12
      %p115 = scmp.lt.s32.totalorder %s12, 3
      %p116 = pnand %p114, %p115
      %p117 = pneg %p116
      // Predicated region
      $region9: #{tpu_custom_call.1} parent=5 // pred_check
        _
      $region10: #{tpu_custom_call.1} parent=5 // pred_check_branch
        %119 = sbr.rel (%p116) target = $region12
      $region11: #{tpu_custom_call.1} parent=5 // pred_region
        %s120 = ssub.s32 %s12, 1
        // Predicated region
        $region13: #{tpu_custom_call.1} parent=11 // pred_check
          %p121 = pneg %p59
        $region14: #{tpu_custom_call.1} parent=11 // pred_check_branch
          %123 = sbr.rel (%p121) target = $region16
        $region15: #{tpu_custom_call.1} parent=11 // pred_region
          _
        $region16: #{tpu_custom_call.1} parent=11 // pred_fallthru
          _
        // Predicated region
        $region17: #{tpu_custom_call.1} parent=11 // pred_check
          %p124 = pneg %p80
        $region18: #{tpu_custom_call.1} parent=11 // pred_check_branch
          %126 = sbr.rel (%p124) target = $region20
        $region19: #{tpu_custom_call.1} parent=11 // pred_region
          _
        $region20: #{tpu_custom_call.1} parent=11 // pred_fallthru
          _
      $region12: #{tpu_custom_call.1} parent=5 // pred_fallthru
        _
      %p127 = scmp.lt.s32.totalorder %s12, 2
      // Predicated region
      $region21: #{tpu_custom_call.1} parent=5 // pred_check
        %p128 = pneg %p127
      $region22: #{tpu_custom_call.1} parent=5 // pred_check_branch
        %130 = sbr.rel (%p128) target = $region24
      $region23: #{tpu_custom_call.1} parent=5 // pred_region
        // Predicated region
        $region25: #{tpu_custom_call.1} parent=23 // pred_check
          %p131 = pneg %p32
        $region26: #{tpu_custom_call.1} parent=23 // pred_check_branch
          %133 = sbr.rel (%p131) target = $region28
        $region27: #{tpu_custom_call.1} parent=23 // pred_region
          %p134 = scmp.lt.s32.totalorder %s12, 1
          %s135 = scalar_select %p134, %s12, 1
          %s136 = smul.addr %s135, 8
          %s137 = scalar_lea.vmem %s0, %s136
        $region28: #{tpu_custom_call.1} parent=23 // pred_fallthru
          _
      $region24: #{tpu_custom_call.1} parent=5 // pred_fallthru
        _
      %p138 = scmp.le.s32.totalorder 1, %s12
      %p139 = scmp.lt.s32.totalorder %s12, 3
      %p140 = pnand %p138, %p139
      %p141 = pneg %p140
      // Predicated region
      $region29: #{tpu_custom_call.1} parent=5 // pred_check
        _
      $region30: #{tpu_custom_call.1} parent=5 // pred_check_branch
        %143 = sbr.rel (%p140) target = $region32
      $region31: #{tpu_custom_call.1} parent=5 // pred_region
        %s144 = ssub.s32 %s12, 1
        %p145 = scmp.lt.s32.totalorder %s17, 1
        %s146 = scalar_select %p145, %s17, 1
        %s147 = smul.addr %s146, 8
        %s148 = scalar_lea.vmem %s0, %s147
        %p149 = pneg %p38
        %p150 = pneg %p35
        %p151 = pneg %p59
        %p152 = pneg %p56
        %p153 = pneg %p80
        %p154 = pneg %p77
        %p155 = pneg %p106
        %p156 = pneg %p103
        %s157 = sand.u32 %s93, 1
        %s158 = scalar_lea.sflag [#allocation3], %s157
        %s159 = sand.u32 %s93, 1
        %s160 = smul.addr %s159, 8
        %s161 = scalar_lea.vmem [#allocation2], %s160
        %p162 = scmp.lt.s32.totalorder %s17, 1
        %s163 = scalar_select %p162, %s17, 1
        %s164 = smul.addr %s163, 8
        %s165 = scalar_lea.vmem %s0, %s164
        %v166 = vld [vmem:[%s165] sm:$0xff]
        %v167 = vld [vmem:[%s1] sm:$0xff]
        %v168 = vld [vmem:[%s1 + $0x8] sm:$0xff]
        %v169 = vld [vmem:[%s1 + $0x10] sm:$0xff]
        %v170 = vld [vmem:[%s1 + $0x18] sm:$0xff]
        %v171 = vld [vmem:[%s1 + $0x20] sm:$0xff]
        %v172 = vld [vmem:[%s1 + $0x28] sm:$0xff]
        %v173 = vld [vmem:[%s1 + $0x30] sm:$0xff]
        %v174 = vld [vmem:[%s1 + $0x38] sm:$0xff]
        %v175 = vld [vmem:[%s1 + $0x40] sm:$0xff]
        %v176 = vld [vmem:[%s1 + $0x48] sm:$0xff]
        %v177 = vld [vmem:[%s1 + $0x50] sm:$0xff]
        %v178 = vld [vmem:[%s1 + $0x58] sm:$0xff]
        %v179 = vld [vmem:[%s1 + $0x60] sm:$0xff]
        %v180 = vld [vmem:[%s1 + $0x68] sm:$0xff]
        %v181 = vld [vmem:[%s1 + $0x70] sm:$0xff]
        %v182 = vld [vmem:[%s1 + $0x78] sm:$0xff]
        %v183 = vld [vmem:[%s2] sm:$0x1]
        %v185 = vlaneseq
        %v186 = vshrl.u32 %v185, 7
        %v187 = vsub.s32 0, %v186
        %v188 = vrot.slane %v183, %v187
        %vm190 = vcmask 261120
        %v192 = vsel %vm190, %v166, 0
        %v195 = vsel %vm190, %v167, 0
        %v198 = vsel %vm190, %v168, 0
        %v201 = vsel %vm190, %v169, 0
        %v204 = vsel %vm190, %v170, 0
        %v207 = vsel %vm190, %v171, 0
        %v210 = vsel %vm190, %v172, 0
        %v213 = vsel %vm190, %v173, 0
        %v216 = vsel %vm190, %v174, 0
        %v219 = vsel %vm190, %v175, 0
        %v222 = vsel %vm190, %v176, 0
        %v225 = vsel %vm190, %v177, 0
        %v228 = vsel %vm190, %v178, 0
        %v231 = vsel %vm190, %v179, 0
        %v234 = vsel %vm190, %v180, 0
        %v237 = vsel %vm190, %v181, 0
        %v240 = vsel %vm190, %v182, 0
        %242 = vmatprep.subr.mxu0 0.0
        %243 = vmatpush1.xpose.msra.mxu0 %v195
        %244 = vmatprep.subr.mxu0 0.0
        %245 = vmatpush1.xpose.msra.mxu0 %v198
        %246 = vmatprep.subr.mxu0 0.0
        %247 = vmatpush1.xpose.msra.mxu0 %v201
        %248 = vmatprep.subr.mxu0 0.0
        %249 = vmatpush1.xpose.msra.mxu0 %v204
        %250 = vmatprep.subr.mxu0 0.0
        %251 = vmatpush1.xpose.msra.mxu0 %v207
        %252 = vmatprep.subr.mxu0 0.0
        %253 = vmatpush1.xpose.msra.mxu0 %v210
        %254 = vmatprep.subr.mxu0 0.0
        %255 = vmatpush1.xpose.msra.mxu0 %v213
        %256 = vmatprep.subr.mxu0 0.0
        %257 = vmatpush1.xpose.msra.mxu0 %v216
        %258 = vmatprep.subr.mxu0 0.0
        %259 = vmatpush1.xpose.msra.mxu0 %v219
        %260 = vmatprep.subr.mxu0 0.0
        %261 = vmatpush1.xpose.msra.mxu0 %v222
        %262 = vmatprep.subr.mxu0 0.0
        %263 = vmatpush1.xpose.msra.mxu0 %v225
        %264 = vmatprep.subr.mxu0 0.0
        %265 = vmatpush1.xpose.msra.mxu0 %v228
        %266 = vmatprep.subr.mxu0 0.0
        %267 = vmatpush1.xpose.msra.mxu0 %v231
        %268 = vmatprep.subr.mxu0 0.0
        %269 = vmatpush1.xpose.msra.mxu0 %v234
        %270 = vmatprep.subr.mxu0 0.0
        %271 = vmatpush1.xpose.msra.mxu0 %v237
        %272 = vmatprep.subr.mxu0 0.0
        %273 = vmatpush1.xpose.msra.mxu0 %v240
        %274 = vmatprep.subr.mxu0 0.0
        %275 = vmatpush1.xpose.msra.mxu0 0.0
        %276 = vmatprep.subr.mxu0 0.0
        %277 = vmatpush1.xpose.msra.mxu0 0.0
        %278 = vmatprep.subr.mxu0 0.0
        %279 = vmatpush1.xpose.msra.mxu0 0.0
        %280 = vmatprep.subr.mxu0 0.0
        %281 = vmatpush1.xpose.msra.mxu0 0.0
        %282 = vmatprep.subr.mxu0 0.0
        %283 = vmatpush1.xpose.msra.mxu0 0.0
        %284 = vmatprep.subr.mxu0 0.0
        %285 = vmatpush1.xpose.msra.mxu0 0.0
        %286 = vmatprep.subr.mxu0 0.0
        %287 = vmatpush1.xpose.msra.mxu0 0.0
        %288 = vmatprep.subr.mxu0 0.0
        %289 = vmatpush1.xpose.msra.mxu0 0.0
        %290 = vmatprep.subr.mxu0 0.0
        %291 = vmatpush1.xpose.msra.mxu0 0.0
        %292 = vmatprep.subr.mxu0 0.0
        %293 = vmatpush1.xpose.msra.mxu0 0.0
        %294 = vmatprep.subr.mxu0 0.0
        %295 = vmatpush1.xpose.msra.mxu0 0.0
        %296 = vmatprep.subr.mxu0 0.0
        %297 = vmatpush1.xpose.msra.mxu0 0.0
        %298 = vmatprep.subr.mxu0 0.0
        %299 = vmatpush1.xpose.msra.mxu0 0.0
        %300 = vmatprep.subr.mxu0 0.0
        %301 = vmatpush1.xpose.msra.mxu0 0.0
        %302 = vmatprep.subr.mxu0 0.0
        %303 = vmatpush1.xpose.msra.mxu0 0.0
        %304 = vmatprep.subr.mxu0 0.0
        %305 = vmatpush1.xpose.msra.mxu0 0.0
        %306 = vmatprep.mubr.f32.mxu0 0.0
        %307 = vmatmul.mubr.f32.gmra.mrb[0].mxu0 %v192
        %v308 = vpop.f32.mrb[0].mxu0
        %v309 = vadd.f32 %v188, %v308
        %v310 = vpop.f32.mrb[0].mxu0
        %311 = vdwg.mxu0
        %v312 = vmul.f32 %v309, %v309
        %313 = vadd.xlane.f32.xlu0 %v312
        %v314 = vpop.xlane.xlu0 %313
        %v315 = vmax.f32 %v314, 1e-24
        %v316 = vrsqrt.pop %v315
        %v317 = vmul.f32 %v309, %v316
        %318 = vst [vmem:[%s161] sm:$0xff] %v317
        %s319 = sand.u32 %s93, 1
        %s320 = scalar_lea.sflag [#allocation3], %s319
        %s321 = sand.u32 %s93, 1
        %s322 = smul.addr %s321, 8
        %s323 = scalar_lea.vmem [#allocation2], %s322
        // Predicated region
        $region33: #{tpu_custom_call.1} parent=31 // pred_check
          %p324 = pneg %p103
        $region34: #{tpu_custom_call.1} parent=31 // pred_check_branch
          %326 = sbr.rel (%p324) target = $region36
        $region35: #{tpu_custom_call.1} parent=31 // pred_region
          %s328 = ssub.s32 128, 128
          %329 = vsyncadd %s320, %s328
          %s330 = smul.addr %s17, 128
          %s331 = scalar_lea.hbm %s3, %s330
          %s333 = sshll.u32 %s323, 4
          %s334 = int_to_ptr.vmem [resolvable:$true] %s333
          %336 = dma.vmem_to_hbm [thread:$0]  %s334, 128, %s331, %s320
        $region36: #{tpu_custom_call.1} parent=31 // pred_fallthru
          _
      $region32: #{tpu_custom_call.1} parent=5 // pred_fallthru
        _
      %p337 = scmp.le.s32.totalorder 2, %s12
      // Predicated region
      $region37: #{tpu_custom_call.1} parent=5 // pred_check
        %p338 = pneg %p337
      $region38: #{tpu_custom_call.1} parent=5 // pred_check_branch
        %340 = sbr.rel (%p338) target = $region40
      $region39: #{tpu_custom_call.1} parent=5 // pred_region
        %s341 = ssub.s32 %s12, 2
        // Predicated region
        $region41: #{tpu_custom_call.1} parent=39 // pred_check
          %p342 = pneg %p109
        $region42: #{tpu_custom_call.1} parent=39 // pred_check_branch
          %344 = sbr.rel (%p342) target = $region44
        $region43: #{tpu_custom_call.1} parent=39 // pred_region
          %s345 = sand.u32 %s94, 1
          %s346 = scalar_lea.sflag [#allocation3], %s345
          %s347 = sand.u32 %s94, 1
          %s348 = smul.addr %s347, 8
          %s349 = scalar_lea.vmem [#allocation2], %s348
          %350 = dma.done %s346, 128
        $region44: #{tpu_custom_call.1} parent=39 // pred_fallthru
          _
      $region40: #{tpu_custom_call.1} parent=5 // pred_fallthru
        _
    $region6: #{tpu_custom_call.1} parent=1 // loop_footer
      %s16 = sadd.s32 1, %s12
    $region7: #{tpu_custom_call.1} parent=1 // loop_footer_branch
      %11 = sbr.rel target = $region3
    $region8: #{tpu_custom_call.1} parent=1 // loop_exit
      _
    %351 = vsyncpa [#allocation3], 1
    %s352 = scalar_lea.sflag [#allocation3], 1
    %353 = vsyncpa %s352, 1

</llo_original>
